<compile_context>
chip_gen: v7x
topology: tpu7x:2x2x1
jax: 0.10.0
libtpu: 0.0.40
codegen_flags: <defaults>
</compile_context>

<pallas_src>
import functools

import numpy as np
import jax
import jax.numpy as jnp
from jax import lax
from jax.experimental import pallas as pl
from jax.experimental.pallas import tpu as pltpu


# ----------------------------------------------------------------------------
# Helpers
# ----------------------------------------------------------------------------
def _resize_matrix_np(in_size, out_size):
    """(out_size, in_size) bilinear interpolation matrix, align_corners=True (f64)."""
    in_size, out_size = int(in_size), int(out_size)
    if out_size == 1:
        src = np.zeros((1,), np.float64)
    else:
        src = np.arange(out_size, dtype=np.float64) * (in_size - 1) / (out_size - 1)
    i0 = np.clip(np.floor(src).astype(np.int64), 0, in_size - 1)
    i1 = np.clip(i0 + 1, 0, in_size - 1)
    frac = src - i0
    w = np.zeros((out_size, in_size), np.float64)
    w[np.arange(out_size), i0] += 1.0 - frac
    w[np.arange(out_size), i1] += frac
    return w


_VMEM_BUDGET_CACHE = [None]


def _vmem_budget_bytes():
    """Per-generation scoped-VMEM budget (passed explicitly as vmem_limit_bytes)."""
    if _VMEM_BUDGET_CACHE[0] is not None:
        return _VMEM_BUDGET_CACHE[0]
    phys = None
    try:
        info = pltpu.get_tpu_info()
        for attr in ("vmem_capacity_bytes", "vmem_bytes", "vmem_size_bytes"):
            v = getattr(info, attr, None)
            if v:
                phys = int(v)
                break
    except Exception:
        phys = None
    if not phys:
        phys = 64 * 1024 * 1024                 # conservative (v7x physical VMEM)
    budget = min((phys * 3) // 4, 96 * 1024 * 1024)   # ~96 MiB v5e/v6e, 48 MiB v7x
    _VMEM_BUDGET_CACHE[0] = budget
    return budget


# ----------------------------------------------------------------------------
# Pallas kernel: separable bilinear resize of a chunk of planes.
# ----------------------------------------------------------------------------
def _resize_planes_kernel(ry_ref, rxt_ref, x_ref, o_ref, *, ry_first):
    """ry_ref: (Ho, H), rxt_ref: (W, Wo), x_ref: (tp, H, W), o_ref: (tp, Ho, Wo).

    Each plane is two plain 2-D MXU matmuls whose (Ho, Wo) result is written
    directly to o_ref[p] (no batched einsum -> no relayout copy before store).
    """
    tp = x_ref.shape[0]
    ry = ry_ref[...]
    rxt = rxt_ref[...]
    cdt = rxt.dtype
    out_is_int = jnp.issubdtype(o_ref.dtype, jnp.integer)

    def body(p, carry):
        x_p = x_ref[p].astype(cdt)                                       # (H, W)
        if ry_first:
            t = jnp.dot(ry, x_p, preferred_element_type=jnp.float32)     # (Ho, W)
            out = jnp.dot(t.astype(cdt), rxt,
                          preferred_element_type=jnp.float32)            # (Ho, Wo)
        else:
            t = jnp.dot(x_p, rxt, preferred_element_type=jnp.float32)    # (H, Wo)
            out = jnp.dot(ry, t.astype(cdt),
                          preferred_element_type=jnp.float32)            # (Ho, Wo)
        if out_is_int:
            out = jnp.round(out)
        o_ref[p] = out.astype(o_ref.dtype)
        return carry

    lax.fori_loop(0, tp, body, 0, unroll=(tp <= 8))


def _resize_planes(x_planes, out_hw):
    """(P, H, W) -> (P, Ho, Wo), bilinear, align_corners=True (one pallas_call)."""
    P, H, W = (int(s) for s in x_planes.shape)
    Ho, Wo = int(out_hw[0]), int(out_hw[1])
    out_dtype = x_planes.dtype
    compute_dtype = jnp.bfloat16 if out_dtype == jnp.bfloat16 else jnp.float32

    ry = jnp.asarray(_resize_matrix_np(H, Ho), compute_dtype)      # (Ho, H)
    rxt = jnp.asarray(_resize_matrix_np(W, Wo).T, compute_dtype)   # (W, Wo)

    # Static pass order: do the cheaper contraction first (fewer MXU MACs).
    cost_ry_first = Ho * W * (H + Wo)
    cost_rx_first = H * Wo * (W + Ho)
    ry_first = cost_ry_first <= cost_rx_first

    # ---- plane-tile sizing against an explicit per-generation VMEM budget ---
    budget = _vmem_budget_bytes()
    ib = jnp.dtype(out_dtype).itemsize
    wb = jnp.dtype(compute_dtype).itemsize
    # Constant weight blocks are fetched once (constant index_map) but still
    # allocated with the default 2 pipeline buffers -> count them twice.
    weight_bytes = 2 * wb * (Ho * H + W * Wo)
    per_plane = 2 * ib * (H * W + Ho * Wo)            # double-buffered in/out tiles
    scratch = 4 * (max(H, Ho) * max(W, Wo) + Ho * Wo) + (4 << 20)
    tp_max = max(1, (budget - weight_bytes - scratch) // max(1, per_plane))
    target_steps = 8                                  # pipeline depth / 2-TC split
    tp = int(max(1, min(tp_max, pl.cdiv(P, target_steps), P)))
    # Ragged final block (P % tp != 0) is handled by Pallas; no jnp.pad needed.
    grid = (pl.cdiv(P, tp),)

    flops = 2 * P * (cost_ry_first if ry_first else cost_rx_first)
    bytes_accessed = ib * P * (H * W + Ho * Wo) + wb * (Ho * H + W * Wo)

    return pl.pallas_call(
        functools.partial(_resize_planes_kernel, ry_first=ry_first),
        out_shape=jax.ShapeDtypeStruct((P, Ho, Wo), out_dtype),
        grid=grid,
        in_specs=[
            pl.BlockSpec((Ho, H), lambda i: (0, 0)),    # grid-invariant -> fetched once
            pl.BlockSpec((W, Wo), lambda i: (0, 0)),    # grid-invariant -> fetched once
            pl.BlockSpec((tp, H, W), lambda i: (i, 0, 0)),
        ],
        out_specs=pl.BlockSpec((tp, Ho, Wo), lambda i: (i, 0, 0)),
        compiler_params=pltpu.CompilerParams(
            dimension_semantics=("parallel",),
            vmem_limit_bytes=int(budget)),
        cost_estimate=pl.CostEstimate(flops=int(flops), transcendentals=0,
                                      bytes_accessed=int(bytes_accessed)),
    )(ry, rxt, x_planes)


# ----------------------------------------------------------------------------
# Intrinsic scale + horizontal-flip adjustment (plain jnp by design:
# a (B,3,3) Pallas kernel is pure launch overhead).
# ----------------------------------------------------------------------------
def _scale_and_flip_intrinsics(k, sx, sy, flip_width):
    scale = jnp.asarray([[sx, 1.0, sx],
                         [1.0, sy, sy],
                         [1.0, 1.0, 1.0]], dtype=k.dtype)
    k_aug = k * scale
    k_flip = k_aug.at[:, 0, 2].set(jnp.asarray(flip_width, k.dtype)
                                   - k_aug[:, 0, 2])
    return k_aug, k_flip


# ----------------------------------------------------------------------------
# AugmentResize forward (Pallas-backed).
# ----------------------------------------------------------------------------
class AugmentResizePallas:
    def __init__(self, imgsize=(256, 832)):
        self.imgsize = (int(imgsize[0]), int(imgsize[1]))
        self.photometric = False  # matches the PyTorch module __init__

    def __call__(self, example_dict):
        d = dict(example_dict)
        is_right = ('input_r1' in d) and ('input_r2' in d)
        _, _, H, W = d['input_l1'].shape
        Ho, Wo = self.imgsize
        sy = Ho / H
        sx = Wo / W

        keys = []
        if 'input_l0' in d:
            keys.append('input_l0')
        keys += ['input_l1', 'input_l2']
        if is_right:
            if 'input_r0' in d:
                keys.append('input_r0')
            keys += ['input_r1', 'input_r2']

        # One pallas_call per image tensor; (B,C,H,W)->(B*C,H,W) is a free view,
        # so no extra HBM copy (previous version's jnp.stack was a full copy).
        for k in keys:
            img = d[k]
            B, C, _, _ = img.shape
            planes = img.reshape(B * C, H, W)
            out_planes = _resize_planes(planes, self.imgsize)
            d[k + '_aug'] = out_planes.reshape(B, C, Ho, Wo)

        d['kl_aug'], d['kl_flip_aug'] = _scale_and_flip_intrinsics(
            d['kl'], sx, sy, Wo)
        if is_right:
            d['kr_aug'], d['kr_flip_aug'] = _scale_and_flip_intrinsics(
                d['kr'], sx, sy, Wo)

        # TODO(synk): PhotometricAugmentation branch is dead code in the
        # reference (self.photometric = False in __init__), so it is not lowered.

        aug = jnp.zeros_like(d['input_size'])
        aug = aug.at[:, 0].set(Ho).at[:, 1].set(Wo)
        d['aug_size'] = aug
        return d


# ----------------------------------------------------------------------------
if __name__ == "__main__":
    key = jax.random.PRNGKey(0)
    B, C, H, W = 2, 3, 16, 16
    IMGSIZE = (32, 64)

    keys = jax.random.split(key, 6)

    def img(k):
        return jax.random.uniform(k, (B, C, H, W), jnp.float32)

    kl = jnp.tile(jnp.asarray([[[58.0, 0.0, 8.0],
                                [0.0, 58.0, 8.0],
                                [0.0, 0.0, 1.0]]], jnp.float32), (B, 1, 1))
    kr = kl * jnp.asarray([[[1.02, 1.0, 0.98],
                            [1.0, 1.01, 1.03],
                            [1.0, 1.0, 1.0]]], jnp.float32)

    example = {
        'input_l0': img(keys[0]),
        'input_l1': img(keys[1]),
        'input_l2': img(keys[2]),
        'input_r0': img(keys[3]),
        'input_r1': img(keys[4]),
        'input_r2': img(keys[5]),
        'kl': kl,
        'kr': kr,
        'input_size': jnp.tile(jnp.asarray([[H, W]], jnp.float32), (B, 1)),
    }

    model = AugmentResizePallas(imgsize=IMGSIZE)
    out = model(example)
    for v in out.values():
        jax.block_until_ready(v)

    # --- sanity checks against a pure-numpy reference ---
    ry = _resize_matrix_np(H, IMGSIZE[0])      # (Ho, H)
    rx = _resize_matrix_np(W, IMGSIZE[1])      # (Wo, W)
    for name in ['input_l0', 'input_l1', 'input_l2',
                 'input_r0', 'input_r1', 'input_r2']:
        ref = np.einsum('oh,bchw,kw->bcok', ry,
                        np.asarray(example[name], np.float64), rx)
        got = np.asarray(out[name + '_aug'])
        np.testing.assert_allclose(got, ref, rtol=1e-4, atol=1e-4)
        assert got.shape == (B, C, IMGSIZE[0], IMGSIZE[1])

    sy, sx = IMGSIZE[0] / H, IMGSIZE[1] / W
    for kname in ['kl', 'kr']:
        k_ref = np.asarray(example[kname]).copy()
        k_ref[:, 0, 0] *= sx
        k_ref[:, 0, 2] *= sx
        k_ref[:, 1, 1] *= sy
        k_ref[:, 1, 2] *= sy
        np.testing.assert_allclose(np.asarray(out[kname + '_aug']), k_ref,
                                   rtol=1e-5, atol=1e-5)
        k_flip_ref = k_ref.copy()
        k_flip_ref[:, 0, 2] = IMGSIZE[1] - k_flip_ref[:, 0, 2]
        np.testing.assert_allclose(np.asarray(out[kname + '_flip_aug']),
                                   k_flip_ref, rtol=1e-5, atol=1e-5)

    assert np.allclose(np.asarray(out['aug_size']),
                       np.tile([[IMGSIZE[0], IMGSIZE[1]]], (B, 1)))

    print("KERNEL_OK")
</pallas_src>

<mosaic_0001>
module attributes {stable_mosaic.version = 11 : i64} {
  func.func @_resize_planes_kernel(%arg0: i32, %arg1: memref<32x16xf32, #tpu.memory_space<vmem>>, %arg2: memref<16x64xf32, #tpu.memory_space<vmem>>, %arg3: memref<1x16x16xf32, #tpu.memory_space<vmem>>, %arg4: memref<1x32x64xf32, #tpu.memory_space<vmem>>) attributes {dimension_semantics = [#tpu.dimension_semantics<parallel>], iteration_bounds = array<i64: 6>, scalar_prefetch = 0 : i64, scratch_operands = 0 : i64, tpu.core_type = #tpu.core_type<tc>, window_params = [{pipeline_mode = #tpu.pipeline_mode<synchronous>, transform_indices = @transform_0, window_bounds = array<i64: 32, 16>}, {pipeline_mode = #tpu.pipeline_mode<synchronous>, transform_indices = @transform_1, window_bounds = array<i64: 16, 64>}, {transform_indices = @transform_2, window_bounds = array<i64: 1, 16, 16>}, {transform_indices = @transform_3, window_bounds = array<i64: 1, 32, 64>}]} {
    %c0 = arith.constant 0 : index
    %c0_0 = arith.constant 0 : index
    %0 = vector.load %arg1[%c0, %c0_0] : memref<32x16xf32, #tpu.memory_space<vmem>>, vector<32x16xf32>
    %c0_1 = arith.constant 0 : index
    %c0_2 = arith.constant 0 : index
    %1 = vector.load %arg2[%c0_1, %c0_2] : memref<16x64xf32, #tpu.memory_space<vmem>>, vector<16x64xf32>
    %c0_i32 = arith.constant 0 : i32
    %2 = arith.index_cast %c0_i32 : i32 to index
    %c0_3 = arith.constant 0 : index
    %c0_4 = arith.constant 0 : index
    %3 = vector.load %arg3[%2, %c0_3, %c0_4] : memref<1x16x16xf32, #tpu.memory_space<vmem>>, vector<1x16x16xf32>
    %4 = vector.shape_cast %3 : vector<1x16x16xf32> to vector<16x16xf32>
    %cst = arith.constant dense<0.000000e+00> : vector<32x16xf32>
    %5 = tpu.matmul %0, %4, %cst {dimension_numbers = #tpu.dot_dimension_numbers<[1], [0], [0], [1], [0, 0, 1, 1], [], []>} : vector<32x16xf32>, vector<16x16xf32>, vector<32x16xf32> -> vector<32x16xf32>
    %cst_5 = arith.constant dense<0.000000e+00> : vector<32x64xf32>
    %6 = tpu.matmul %5, %1, %cst_5 {dimension_numbers = #tpu.dot_dimension_numbers<[1], [0], [0], [1], [0, 0, 1, 1], [], []>} : vector<32x16xf32>, vector<16x64xf32>, vector<32x64xf32> -> vector<32x64xf32>
    %7 = arith.index_cast %c0_i32 : i32 to index
    %c0_6 = arith.constant 0 : index
    %c0_7 = arith.constant 0 : index
    %8 = vector.load %arg4[%7, %c0_6, %c0_7] : memref<1x32x64xf32, #tpu.memory_space<vmem>>, vector<1x32x64xf32>
    %9 = vector.shape_cast %8 : vector<1x32x64xf32> to vector<32x64xf32>
    %10 = vector.shape_cast %6 : vector<32x64xf32> to vector<1x32x64xf32>
    tpu.vector_store %arg4[%7, %c0_6, %c0_7], %10 {strides = array<i32>} : memref<1x32x64xf32, #tpu.memory_space<vmem>>, vector<1x32x64xf32>,
    %c1_i32 = arith.constant 1 : i32
    return
  }
  func.func @transform_0(%arg0: i32) -> (i32, i32) {
    %c0_i32 = arith.constant 0 : i32
    %c0_i32_0 = arith.constant 0 : i32
    %c0_i32_1 = arith.constant 0 : i32
    return %c0_i32, %c0_i32_0 : i32, i32
  }
  func.func @transform_1(%arg0: i32) -> (i32, i32) {
    %c0_i32 = arith.constant 0 : i32
    %c0_i32_0 = arith.constant 0 : i32
    %c0_i32_1 = arith.constant 0 : i32
    return %c0_i32, %c0_i32_0 : i32, i32
  }
  func.func @transform_2(%arg0: i32) -> (i32, i32, i32) {
    %c0_i32 = arith.constant 0 : i32
    %c0_i32_0 = arith.constant 0 : i32
    %c0_i32_1 = arith.constant 0 : i32
    return %arg0, %c0_i32, %c0_i32_0 : i32, i32, i32
  }
  func.func @transform_3(%arg0: i32) -> (i32, i32, i32) {
    %c0_i32 = arith.constant 0 : i32
    %c0_i32_0 = arith.constant 0 : i32
    %c0_i32_1 = arith.constant 0 : i32
    return %arg0, %c0_i32, %c0_i32_0 : i32, i32, i32
  }
}

</mosaic_0001>

<llo_original>
// kernel: tpu_custom_call.1
$region0: #{tpu_custom_call.1}
  #allocation0 [shape = 'u32[]', space=smem, size = 0x4, offset = 0x4, fixed_abs, tag = 'smem constant byte address 0x4 - core index']
  #allocation1 [shape = 'u32[144,128]{1,0:T(1,128)}', space=vmem, size = 0x12000, scoped, tag = 'internal scratch']
  %s0 = inlined_call_operand.vmem [shape: f32[32,16], index: 0, kind: input, shape index: {}]
  %s1 = inlined_call_operand.vmem [shape: f32[16,64], index: 1, kind: input, shape index: {}]
  %s2 = inlined_call_operand.hbm [shape: f32[6,16,16], index: 2, kind: input, shape index: {}]
  %s3 = inlined_call_operand.hbm [shape: f32[6,32,64], index: 3, kind: output, shape index: {}]
  %s4 = sld [smem:[#allocation0]]
  $region49: #{tpu_custom_call.1} parent=0
    _
  %s6 = ssub.s32 1, %s4
  %s7 = scalar_select 0, %s6, %s4
  $region1: #{tpu_custom_call.1} parent=0
    #allocation2 [shape = 'u8[16384]{0}', space=vmem, size = 0x4000, scoped, tag = 'input window, operand 2']
    #allocation3 [shape = 's32[2]{0}', space=sflag, size = 0x8, scoped, tag = 'scoped memory for tpu_custom_call.1']
    #allocation4 [shape = 's32[2]{0}', space=sflag, size = 0x8, scoped, tag = 'scoped memory for tpu_custom_call.1']
    #allocation5 [shape = 'u8[32768]{0}', space=vmem, size = 0x8000, scoped, tag = 'output window, operand 0']
    %8 = vsyncpa [#allocation3], 0
    %s9 = scalar_lea.sflag [#allocation3], 1
    %10 = vsyncpa %s9, 0
    %11 = vsyncpa [#allocation4], 0
    %s12 = scalar_lea.sflag [#allocation4], 1
    %13 = vsyncpa %s12, 0
    loop: start=0, step=1, limit=8
    $region2: #{tpu_custom_call.1} parent=1 // loop_pre_header
      _
    $region3: #{tpu_custom_call.1} parent=1 // loop_header
      %s15 = sphi 0, %s19
      %p16 = scmp.ge.s32.totalorder %s15, 8
      %s23 = sphi 0, %s23
      %s25 = sphi 0, %s23
      %s26 = sphi 0, %s25
      %s40 = sphi 0, %s26
      %s44 = sphi 0, %s44
      %s46 = sphi 0, %s44
      %s47 = sphi 0, %s46
      %s61 = sphi 0, %s47
      %s67 = sphi 0, %s69
      %s70 = sphi 0, %s67
      %s71 = sphi 0, %s70
      %s87 = sphi 0, %s71
      %s93 = sphi 0, %s95
      %s96 = sphi 0, %s93
      %s97 = sphi 0, %s96
      %s113 = sphi 0, %s97
    $region4: #{tpu_custom_call.1} parent=1 // loop_header_branch
      %18 = sbr.rel (%p16) target = $region8
    $region5: #{tpu_custom_call.1} parent=1 // loop_body
      %s20 = ssub.s32 %s15, 1
      %s21 = ssub.s32 %s15, 2
      %s22 = sadd.s32 %s15, 1
      %s24 = sadd.s32 %s23, 1
      %p27 = scmp.eq.s32.totalorder %s15, 5
      %p28 = scmp.ne.s32.totalorder %s23, %s25
      %p29 = scmp.eq.s32.totalorder %s15, 0
      %p30 = por %p28, %p29
      %p31 = scmp.ne.s32.totalorder %s23, %s25
      %p32 = scmp.eq.s32.totalorder %s20, 5
      %p33 = por %p31, %p32
      %p34 = scmp.ne.s32.totalorder %s25, %s26
      %p35 = scmp.eq.s32.totalorder %s20, 0
      %p36 = por %p34, %p35
      %p37 = scmp.ne.s32.totalorder %s25, %s26
      %p38 = scmp.eq.s32.totalorder %s21, 5
      %p39 = por %p37, %p38
      %p41 = scmp.ne.s32.totalorder %s26, %s40
      %p42 = scmp.eq.s32.totalorder %s21, 0
      %p43 = por %p41, %p42
      %s45 = sadd.s32 %s44, 1
      %p48 = scmp.eq.s32.totalorder %s15, 5
      %p49 = scmp.ne.s32.totalorder %s44, %s46
      %p50 = scmp.eq.s32.totalorder %s15, 0
      %p51 = por %p49, %p50
      %p52 = scmp.ne.s32.totalorder %s44, %s46
      %p53 = scmp.eq.s32.totalorder %s20, 5
      %p54 = por %p52, %p53
      %p55 = scmp.ne.s32.totalorder %s46, %s47
      %p56 = scmp.eq.s32.totalorder %s20, 0
      %p57 = por %p55, %p56
      %p58 = scmp.ne.s32.totalorder %s46, %s47
      %p59 = scmp.eq.s32.totalorder %s21, 5
      %p60 = por %p58, %p59
      %p62 = scmp.ne.s32.totalorder %s47, %s61
      %p63 = scmp.eq.s32.totalorder %s21, 0
      %p64 = por %p62, %p63
      %s65 = ssub.s32 %s15, %s22
      %p66 = scmp.eq.s32.totalorder %s65, 0
      %s68 = sadd.s32 %s67, 1
      %s69 = scalar_select %p66, %s67, %s68
      %p72 = pneg %p66
      %p73 = scmp.eq.s32.totalorder %s15, 5
      %p74 = por %p72, %p73
      %p75 = scmp.ne.s32.totalorder %s67, %s70
      %p76 = scmp.eq.s32.totalorder %s15, 0
      %p77 = por %p75, %p76
      %p78 = scmp.ne.s32.totalorder %s67, %s70
      %p79 = scmp.eq.s32.totalorder %s20, 5
      %p80 = por %p78, %p79
      %p81 = scmp.ne.s32.totalorder %s70, %s71
      %p82 = scmp.eq.s32.totalorder %s20, 0
      %p83 = por %p81, %p82
      %p84 = scmp.ne.s32.totalorder %s70, %s71
      %p85 = scmp.eq.s32.totalorder %s21, 5
      %p86 = por %p84, %p85
      %p88 = scmp.ne.s32.totalorder %s71, %s87
      %p89 = scmp.eq.s32.totalorder %s21, 0
      %p90 = por %p88, %p89
      %s91 = ssub.s32 %s15, %s22
      %p92 = scmp.eq.s32.totalorder %s91, 0
      %s94 = sadd.s32 %s93, 1
      %s95 = scalar_select %p92, %s93, %s94
      %p98 = pneg %p92
      %p99 = scmp.eq.s32.totalorder %s15, 5
      %p100 = por %p98, %p99
      %p101 = scmp.ne.s32.totalorder %s93, %s96
      %p102 = scmp.eq.s32.totalorder %s15, 0
      %p103 = por %p101, %p102
      %p104 = scmp.ne.s32.totalorder %s93, %s96
      %p105 = scmp.eq.s32.totalorder %s20, 5
      %p106 = por %p104, %p105
      %p107 = scmp.ne.s32.totalorder %s96, %s97
      %p108 = scmp.eq.s32.totalorder %s20, 0
      %p109 = por %p107, %p108
      %p110 = scmp.ne.s32.totalorder %s96, %s97
      %p111 = scmp.eq.s32.totalorder %s21, 5
      %p112 = por %p110, %p111
      %p114 = scmp.ne.s32.totalorder %s97, %s113
      %p115 = scmp.eq.s32.totalorder %s21, 0
      %p116 = por %p114, %p115
      %p117 = scmp.le.s32.totalorder 1, %s15
      %p118 = scmp.lt.s32.totalorder %s15, 7
      %p119 = pnand %p117, %p118
      %p120 = pneg %p119
      // Predicated region
      $region9: #{tpu_custom_call.1} parent=5 // pred_check
        _
      $region10: #{tpu_custom_call.1} parent=5 // pred_check_branch
        %122 = sbr.rel (%p119) target = $region12
      $region11: #{tpu_custom_call.1} parent=5 // pred_region
        %s123 = ssub.s32 %s15, 1
        // Predicated region
        $region13: #{tpu_custom_call.1} parent=11 // pred_check
          %p124 = pneg %p36
        $region14: #{tpu_custom_call.1} parent=11 // pred_check_branch
          %126 = sbr.rel (%p124) target = $region16
        $region15: #{tpu_custom_call.1} parent=11 // pred_region
          _
        $region16: #{tpu_custom_call.1} parent=11 // pred_fallthru
          _
        // Predicated region
        $region17: #{tpu_custom_call.1} parent=11 // pred_check
          %p127 = pneg %p57
        $region18: #{tpu_custom_call.1} parent=11 // pred_check_branch
          %129 = sbr.rel (%p127) target = $region20
        $region19: #{tpu_custom_call.1} parent=11 // pred_region
          _
        $region20: #{tpu_custom_call.1} parent=11 // pred_fallthru
          _
      $region12: #{tpu_custom_call.1} parent=5 // pred_fallthru
        _
      %p130 = scmp.lt.s32.totalorder %s15, 6
      // Predicated region
      $region21: #{tpu_custom_call.1} parent=5 // pred_check
        %p131 = pneg %p130
      $region22: #{tpu_custom_call.1} parent=5 // pred_check_branch
        %133 = sbr.rel (%p131) target = $region24
      $region23: #{tpu_custom_call.1} parent=5 // pred_region
        // Predicated region
        $region25: #{tpu_custom_call.1} parent=23 // pred_check
          %p134 = pneg %p77
        $region26: #{tpu_custom_call.1} parent=23 // pred_check_branch
          %136 = sbr.rel (%p134) target = $region28
        $region27: #{tpu_custom_call.1} parent=23 // pred_region
          %s137 = sand.u32 %s67, 1
          %s138 = scalar_lea.sflag [#allocation3], %s137
          %s139 = sand.u32 %s67, 1
          %s140 = smul.addr %s139, 16
          %s141 = scalar_lea.vmem [#allocation2], %s140
          %s143 = ssub.s32 256, 256
          %144 = vsyncadd %s138, %s143
          %s145 = smul.addr %s15, 2
          %s146 = smul.addr %s145, 128
          %s147 = scalar_lea.hbm %s2, %s146
          %s148 = sshll.u32 %s141, 4
          %s149 = int_to_ptr.vmem [resolvable:$true] %s148
          %154 = dma.hbm_to_vmem [thread:$0]  %s147, 256, %s149, %s138, 128, 128, 8
        $region28: #{tpu_custom_call.1} parent=23 // pred_fallthru
          _
      $region24: #{tpu_custom_call.1} parent=5 // pred_fallthru
        _
      %p155 = scmp.le.s32.totalorder 1, %s15
      %p156 = scmp.lt.s32.totalorder %s15, 7
      %p157 = pnand %p155, %p156
      %p158 = pneg %p157
      // Predicated region
      $region29: #{tpu_custom_call.1} parent=5 // pred_check
        _
      $region30: #{tpu_custom_call.1} parent=5 // pred_check_branch
        %160 = sbr.rel (%p157) target = $region32
      $region31: #{tpu_custom_call.1} parent=5 // pred_region
        %s161 = ssub.s32 %s15, 1
        %s162 = sand.u32 %s70, 1
        %s163 = scalar_lea.sflag [#allocation3], %s162
        %s164 = sand.u32 %s70, 1
        %s165 = smul.addr %s164, 16
        %s166 = scalar_lea.vmem [#allocation2], %s165
        // Predicated region
        $region33: #{tpu_custom_call.1} parent=31 // pred_check
          %p167 = pneg %p83
        $region34: #{tpu_custom_call.1} parent=31 // pred_check_branch
          %169 = sbr.rel (%p167) target = $region36
        $region35: #{tpu_custom_call.1} parent=31 // pred_region
          %170 = dma.done %s163, 256
        $region36: #{tpu_custom_call.1} parent=31 // pred_fallthru
          _
        %p171 = pneg %p36
        %p172 = pneg %p33
        %p173 = pneg %p57
        %p174 = pneg %p54
        %s175 = sand.u32 %s70, 1
        %s176 = scalar_lea.sflag [#allocation3], %s175
        %s177 = sand.u32 %s70, 1
        %s178 = smul.addr %s177, 16
        %s179 = scalar_lea.vmem [#allocation2], %s178
        %p180 = pneg %p83
        %p181 = pneg %p80
        %p182 = pneg %p109
        %p183 = pneg %p106
        %s184 = sand.u32 %s96, 1
        %s185 = scalar_lea.sflag [#allocation4], %s184
        %s186 = sand.u32 %s96, 1
        %s187 = smul.addr %s186, 32
        %s188 = scalar_lea.vmem [#allocation5], %s187
        %v189 = vld [vmem:[%s0] sm:$0xff]
        %v190 = vld [vmem:[%s0 + $0x8] sm:$0xff]
        %v191 = vld [vmem:[%s0 + $0x10] sm:$0xff]
        %v192 = vld [vmem:[%s0 + $0x18] sm:$0xff]
        %v193 = vld [vmem:[%s1] sm:$0xff]
        %v194 = vld [vmem:[%s1 + $0x8] sm:$0xff]
        %v195 = vld [vmem:[%s166] sm:$0xff]
        %v196 = vld [vmem:[%s166 + $0x8] sm:$0xff]
        %vm197 = vcmask 130048
        %v199 = vsel %vm197, %v189, 0
        %v202 = vsel %vm197, %v190, 0
        %v205 = vsel %vm197, %v191, 0
        %v208 = vsel %vm197, %v192, 0
        %210 = vmatprep.subr.mxu0 0.0
        %211 = vmatpush1.msra.mxu0 %v195
        %212 = vmatprep.subr.mxu0 0.0
        %213 = vmatpush1.msra.mxu0 %v196
        %214 = vmatprep.subr.mxu0 0.0
        %215 = vmatpush1.msra.mxu0 0.0
        %216 = vmatprep.subr.mxu0 0.0
        %217 = vmatpush1.msra.mxu0 0.0
        %218 = vmatprep.subr.mxu0 0.0
        %219 = vmatpush1.msra.mxu0 0.0
        %220 = vmatprep.subr.mxu0 0.0
        %221 = vmatpush1.msra.mxu0 0.0
        %222 = vmatprep.subr.mxu0 0.0
        %223 = vmatpush1.msra.mxu0 0.0
        %224 = vmatprep.subr.mxu0 0.0
        %225 = vmatpush1.msra.mxu0 0.0
        %226 = vmatprep.subr.mxu0 0.0
        %227 = vmatpush1.msra.mxu0 0.0
        %228 = vmatprep.subr.mxu0 0.0
        %229 = vmatpush1.msra.mxu0 0.0
        %230 = vmatprep.subr.mxu0 0.0
        %231 = vmatpush1.msra.mxu0 0.0
        %232 = vmatprep.subr.mxu0 0.0
        %233 = vmatpush1.msra.mxu0 0.0
        %234 = vmatprep.subr.mxu0 0.0
        %235 = vmatpush1.msra.mxu0 0.0
        %236 = vmatprep.subr.mxu0 0.0
        %237 = vmatpush1.msra.mxu0 0.0
        %238 = vmatprep.subr.mxu0 0.0
        %239 = vmatpush1.msra.mxu0 0.0
        %240 = vmatprep.subr.mxu0 0.0
        %241 = vmatpush1.msra.mxu0 0.0
        %242 = vmatprep.subr.mxu0 0.0
        %243 = vmatpush1.msra.mxu0 0.0
        %244 = vmatprep.subr.mxu0 0.0
        %245 = vmatpush1.msra.mxu0 0.0
        %246 = vmatprep.subr.mxu0 0.0
        %247 = vmatpush1.msra.mxu0 0.0
        %248 = vmatprep.subr.mxu0 0.0
        %249 = vmatpush1.msra.mxu0 0.0
        %250 = vmatprep.subr.mxu0 0.0
        %251 = vmatpush1.msra.mxu0 0.0
        %252 = vmatprep.subr.mxu0 0.0
        %253 = vmatpush1.msra.mxu0 0.0
        %254 = vmatprep.subr.mxu0 0.0
        %255 = vmatpush1.msra.mxu0 0.0
        %256 = vmatprep.subr.mxu0 0.0
        %257 = vmatpush1.msra.mxu0 0.0
        %258 = vmatprep.subr.mxu0 0.0
        %259 = vmatpush1.msra.mxu0 0.0
        %260 = vmatprep.subr.mxu0 0.0
        %261 = vmatpush1.msra.mxu0 0.0
        %262 = vmatprep.subr.mxu0 0.0
        %263 = vmatpush1.msra.mxu0 0.0
        %264 = vmatprep.subr.mxu0 0.0
        %265 = vmatpush1.msra.mxu0 0.0
        %266 = vmatprep.subr.mxu0 0.0
        %267 = vmatpush1.msra.mxu0 0.0
        %268 = vmatprep.subr.mxu0 0.0
        %269 = vmatpush1.msra.mxu0 0.0
        %270 = vmatprep.subr.mxu0 0.0
        %271 = vmatpush1.msra.mxu0 0.0
        %272 = vmatprep.subr.mxu0 0.0
        %273 = vmatpush1.msra.mxu0 0.0
        %274 = vmatprep.mubr.f32.mxu0 0.0
        %275 = vmatmul.mubr.f32.gmra.mrb[0].mxu0 %v199
        %v276 = vpop.f32.mrb[0].mxu0
        %v277 = vadd.f32 0.0, %v276
        %v278 = vpop.f32.mrb[0].mxu0
        %279 = vmatprep.mubr.f32.mxu0 0.0
        %280 = vmatmul.mubr.f32.gmra.mrb[0].mxu0 %v202
        %v281 = vpop.f32.mrb[0].mxu0
        %v282 = vadd.f32 0.0, %v281
        %v283 = vpop.f32.mrb[0].mxu0
        %284 = vmatprep.mubr.f32.mxu0 0.0
        %285 = vmatmul.mubr.f32.gmra.mrb[0].mxu0 %v205
        %v286 = vpop.f32.mrb[0].mxu0
        %v287 = vadd.f32 0.0, %v286
        %v288 = vpop.f32.mrb[0].mxu0
        %289 = vmatprep.mubr.f32.mxu0 0.0
        %290 = vmatmul.mubr.f32.gmra.mrb[0].mxu0 %v208
        %v291 = vpop.f32.mrb[0].mxu0
        %v292 = vadd.f32 0.0, %v291
        %v293 = vpop.f32.mrb[0].mxu0
        %294 = vdwg.mxu0
        %v296 = vsel %vm197, %v277, 0
        %v299 = vsel %vm197, %v282, 0
        %v302 = vsel %vm197, %v287, 0
        %v305 = vsel %vm197, %v292, 0
        %307 = vmatprep.subr.mxu0 0.0
        %308 = vmatpush1.msra.mxu0 %v193
        %309 = vmatprep.subr.mxu0 0.0
        %310 = vmatpush1.msra.mxu0 %v194
        %311 = vmatprep.subr.mxu0 0.0
        %312 = vmatpush1.msra.mxu0 0.0
        %313 = vmatprep.subr.mxu0 0.0
        %314 = vmatpush1.msra.mxu0 0.0
        %315 = vmatprep.subr.mxu0 0.0
        %316 = vmatpush1.msra.mxu0 0.0
        %317 = vmatprep.subr.mxu0 0.0
        %318 = vmatpush1.msra.mxu0 0.0
        %319 = vmatprep.subr.mxu0 0.0
        %320 = vmatpush1.msra.mxu0 0.0
        %321 = vmatprep.subr.mxu0 0.0
        %322 = vmatpush1.msra.mxu0 0.0
        %323 = vmatprep.subr.mxu0 0.0
        %324 = vmatpush1.msra.mxu0 0.0
        %325 = vmatprep.subr.mxu0 0.0
        %326 = vmatpush1.msra.mxu0 0.0
        %327 = vmatprep.subr.mxu0 0.0
        %328 = vmatpush1.msra.mxu0 0.0
        %329 = vmatprep.subr.mxu0 0.0
        %330 = vmatpush1.msra.mxu0 0.0
        %331 = vmatprep.subr.mxu0 0.0
        %332 = vmatpush1.msra.mxu0 0.0
        %333 = vmatprep.subr.mxu0 0.0
        %334 = vmatpush1.msra.mxu0 0.0
        %335 = vmatprep.subr.mxu0 0.0
        %336 = vmatpush1.msra.mxu0 0.0
        %337 = vmatprep.subr.mxu0 0.0
        %338 = vmatpush1.msra.mxu0 0.0
        %339 = vmatprep.subr.mxu0 0.0
        %340 = vmatpush1.msra.mxu0 0.0
        %341 = vmatprep.subr.mxu0 0.0
        %342 = vmatpush1.msra.mxu0 0.0
        %343 = vmatprep.subr.mxu0 0.0
        %344 = vmatpush1.msra.mxu0 0.0
        %345 = vmatprep.subr.mxu0 0.0
        %346 = vmatpush1.msra.mxu0 0.0
        %347 = vmatprep.subr.mxu0 0.0
        %348 = vmatpush1.msra.mxu0 0.0
        %349 = vmatprep.subr.mxu0 0.0
        %350 = vmatpush1.msra.mxu0 0.0
        %351 = vmatprep.subr.mxu0 0.0
        %352 = vmatpush1.msra.mxu0 0.0
        %353 = vmatprep.subr.mxu0 0.0
        %354 = vmatpush1.msra.mxu0 0.0
        %355 = vmatprep.subr.mxu0 0.0
        %356 = vmatpush1.msra.mxu0 0.0
        %357 = vmatprep.subr.mxu0 0.0
        %358 = vmatpush1.msra.mxu0 0.0
        %359 = vmatprep.subr.mxu0 0.0
        %360 = vmatpush1.msra.mxu0 0.0
        %361 = vmatprep.subr.mxu0 0.0
        %362 = vmatpush1.msra.mxu0 0.0
        %363 = vmatprep.subr.mxu0 0.0
        %364 = vmatpush1.msra.mxu0 0.0
        %365 = vmatprep.subr.mxu0 0.0
        %366 = vmatpush1.msra.mxu0 0.0
        %367 = vmatprep.subr.mxu0 0.0
        %368 = vmatpush1.msra.mxu0 0.0
        %369 = vmatprep.subr.mxu0 0.0
        %370 = vmatpush1.msra.mxu0 0.0
        %371 = vmatprep.mubr.f32.mxu0 0.0
        %372 = vmatmul.mubr.f32.gmra.mrb[0].mxu0 %v296
        %v373 = vpop.f32.mrb[0].mxu0
        %v374 = vadd.f32 0.0, %v373
        %v375 = vpop.f32.mrb[0].mxu0
        %376 = vmatprep.mubr.f32.mxu0 0.0
        %377 = vmatmul.mubr.f32.gmra.mrb[0].mxu0 %v299
        %v378 = vpop.f32.mrb[0].mxu0
        %v379 = vadd.f32 0.0, %v378
        %v380 = vpop.f32.mrb[0].mxu0
        %381 = vmatprep.mubr.f32.mxu0 0.0
        %382 = vmatmul.mubr.f32.gmra.mrb[0].mxu0 %v302
        %v383 = vpop.f32.mrb[0].mxu0
        %v384 = vadd.f32 0.0, %v383
        %v385 = vpop.f32.mrb[0].mxu0
        %386 = vmatprep.mubr.f32.mxu0 0.0
        %387 = vmatmul.mubr.f32.gmra.mrb[0].mxu0 %v305
        %v388 = vpop.f32.mrb[0].mxu0
        %v389 = vadd.f32 0.0, %v388
        %v390 = vpop.f32.mrb[0].mxu0
        %391 = vdwg.mxu0
        %vm392 = vcmask 523264
        %393 = vst.msk [vmem:[%s188] sm:$0xff] %vm392, %v374
        %394 = vst.msk [vmem:[%s188 + $0x8] sm:$0xff] %vm392, %v379
        %395 = vst.msk [vmem:[%s188 + $0x10] sm:$0xff] %vm392, %v384
        %396 = vst.msk [vmem:[%s188 + $0x18] sm:$0xff] %vm392, %v389
        %s397 = sand.u32 %s96, 1
        %s398 = scalar_lea.sflag [#allocation4], %s397
        %s399 = sand.u32 %s96, 1
        %s400 = smul.addr %s399, 32
        %s401 = scalar_lea.vmem [#allocation5], %s400
        // Predicated region
        $region37: #{tpu_custom_call.1} parent=31 // pred_check
          %p402 = pneg %p106
        $region38: #{tpu_custom_call.1} parent=31 // pred_check_branch
          %404 = sbr.rel (%p402) target = $region40
        $region39: #{tpu_custom_call.1} parent=31 // pred_region
          %s406 = ssub.s32 512, 512
          %407 = vsyncadd %s398, %s406
          %s408 = smul.addr %s20, 4
          %s409 = smul.addr %s408, 128
          %s410 = scalar_lea.hbm %s3, %s409
          %s411 = sshll.u32 %s401, 4
          %s412 = int_to_ptr.vmem [resolvable:$true] %s411
          %417 = dma.vmem_to_hbm [thread:$0]  %s412, 512, %s410, %s398, 128, 128, 8
        $region40: #{tpu_custom_call.1} parent=31 // pred_fallthru
          _
      $region32: #{tpu_custom_call.1} parent=5 // pred_fallthru
        _
      %p418 = scmp.le.s32.totalorder 2, %s15
      // Predicated region
      $region41: #{tpu_custom_call.1} parent=5 // pred_check
        %p419 = pneg %p418
      $region42: #{tpu_custom_call.1} parent=5 // pred_check_branch
        %421 = sbr.rel (%p419) target = $region44
      $region43: #{tpu_custom_call.1} parent=5 // pred_region
        %s422 = ssub.s32 %s15, 2
        // Predicated region
        $region45: #{tpu_custom_call.1} parent=43 // pred_check
          %p423 = pneg %p112
        $region46: #{tpu_custom_call.1} parent=43 // pred_check_branch
          %425 = sbr.rel (%p423) target = $region48
        $region47: #{tpu_custom_call.1} parent=43 // pred_region
          %s426 = sand.u32 %s97, 1
          %s427 = scalar_lea.sflag [#allocation4], %s426
          %s428 = sand.u32 %s97, 1
          %s429 = smul.addr %s428, 32
          %s430 = scalar_lea.vmem [#allocation5], %s429
          %431 = dma.done %s427, 512
        $region48: #{tpu_custom_call.1} parent=43 // pred_fallthru
          _
      $region44: #{tpu_custom_call.1} parent=5 // pred_fallthru
        _
    $region6: #{tpu_custom_call.1} parent=1 // loop_footer
      %s19 = sadd.s32 1, %s15
    $region7: #{tpu_custom_call.1} parent=1 // loop_footer_branch
      %14 = sbr.rel target = $region3
    $region8: #{tpu_custom_call.1} parent=1 // loop_exit
      _
    %432 = vsyncpa [#allocation3], 1
    %s433 = scalar_lea.sflag [#allocation3], 1
    %434 = vsyncpa %s433, 1
    %435 = vsyncpa [#allocation4], 1
    %s436 = scalar_lea.sflag [#allocation4], 1
    %437 = vsyncpa %s436, 1

</llo_original>
